<compile_context>
chip_gen: v6e
topology: v6e:2x2x1
jax: 0.10.0
libtpu: 0.0.40
codegen_flags: <defaults>
</compile_context>

<pallas_src>
import jax
import jax.numpy as jnp
from jax import lax
from jax.experimental import pallas as pl
from jax.experimental.pallas import tpu as pltpu

EPS = 1e-5
_MAX_BT = 8            # static-unroll bound for the per-batch matmul loop


def _vmem_capacity_bytes():
    try:
        return int(pltpu.get_tpu_info().vmem_capacity_bytes)
    except Exception:
        return 64 * 1024 * 1024          # conservative fallback: v7x per-core VMEM


# --------------------------------------------------------------------------------------
# Shared in-kernel helpers
# --------------------------------------------------------------------------------------
def _conv_taps(x_ref, cdtype):
    """Return (x[p], x[p-1], x[p+1]) for the whole (bt, Cin, L) tile, zero at the
    sequence boundaries, cast to the MXU compute dtype.  Shifts use pltpu.roll (XLU)."""
    bt, cin, L = x_ref.shape
    xf = x_ref[...]                                               # (bt, Cin, L) f32
    lane = lax.broadcasted_iota(jnp.int32, (bt, cin, L), 2)
    xl = jnp.where(lane == 0, 0.0, pltpu.roll(xf, 1, 2))          # x[p-1], 0 at p=0
    xr = jnp.where(lane == L - 1, 0.0, pltpu.roll(xf, L - 1, 2))  # x[p+1], 0 at p=L-1
    return xf.astype(cdtype), xl.astype(cdtype), xr.astype(cdtype)


def _conv_row(w_ref, x, xl, xr, j):
    """k=3 'same' conv for batch row j: three accumulated MXU matmuls, f32 accumulate."""
    y = jnp.dot(w_ref[0], xl[j], preferred_element_type=jnp.float32)
    y = y + jnp.dot(w_ref[1], x[j], preferred_element_type=jnp.float32)
    y = y + jnp.dot(w_ref[2], xr[j], preferred_element_type=jnp.float32)
    return y                                                      # (Cout, L) f32


# --------------------------------------------------------------------------------------
# Pass 1: per-tile BN partial statistics (no conv output written to HBM)
# --------------------------------------------------------------------------------------
def up_stats_kernel(x_ref, w_ref, stats_ref):
    # x_ref: (bt, Cin, L) f32 | w_ref: (3, Cout, Cin) compute dtype
    # stats_ref: (1, Cout, 2) f32  -- col 0 = sum(y), col 1 = sum(y*y) over this tile
    bt, _, L = x_ref.shape
    cout = w_ref.shape[1]
    x, xl, xr = _conv_taps(x_ref, w_ref.dtype)
    r1 = jnp.zeros((cout, L), jnp.float32)
    r2 = jnp.zeros((cout, L), jnp.float32)
    for j in range(bt):                       # static unroll; bt <= _MAX_BT
        y = _conv_row(w_ref, x, xl, xr, j)
        r1 = r1 + y
        r2 = r2 + y * y
    s1 = jnp.sum(r1, axis=-1, keepdims=True)  # (Cout, 1)
    s2 = jnp.sum(r2, axis=-1, keepdims=True)
    stats_ref[0] = jnp.concatenate([s1, s2], axis=1)


# --------------------------------------------------------------------------------------
# Pass 2: recompute conv, apply folded BN affine + ReLU, write final output
# --------------------------------------------------------------------------------------
def up_apply_kernel(x_ref, w_ref, scale_ref, shift_ref, o_ref):
    bt = x_ref.shape[0]
    x, xl, xr = _conv_taps(x_ref, w_ref.dtype)
    scale = scale_ref[...]                    # (Cout, 1) f32: gamma * rsqrt(var + eps)
    shift = shift_ref[...]                    # (Cout, 1) f32: beta - mean * scale
    for j in range(bt):                       # static unroll; bt <= _MAX_BT
        y = _conv_row(w_ref, x, xl, xr, j)
        o_ref[j] = jnp.maximum(y * scale + shift, 0.0).astype(o_ref.dtype)


# --------------------------------------------------------------------------------------
# Tile selection: whole batch rows per tile (no halo), VMEM-budgeted, even-split aware
# --------------------------------------------------------------------------------------
def _choose_batch_tile(N, Cin, Cout, L, compute_itemsize, vmem_budget):
    def tile_bytes(d):
        io = 2 * 4 * d * L * (Cin + Cout)                # double-buffered x + out blocks
        tmp = d * L * 3 * Cin * compute_itemsize         # in-kernel tap copies
        acc = 3 * 4 * Cout * L                           # per-row f32 conv / stats temps
        return io + tmp + acc + 4 * 3 * Cout * Cin

    divs = [d for d in range(1, N + 1) if N % d == 0 and d <= _MAX_BT]
    fitting = [d for d in divs if tile_bytes(d) <= vmem_budget]
    if not fitting:
        # TODO(synk): intra-L tiling with a 1-element halo for very long sequences.
        return 1
    best = max(fitting)
    # Prefer an even number of grid steps (both v7x TensorCores busy) as long as it
    # does not shrink the tile below half of the best fitting tile.
    even = [d for d in fitting if (N // d) % 2 == 0]
    if even and 2 * max(even) >= best:
        return max(even)
    return best


# --------------------------------------------------------------------------------------
# Wrapper
# --------------------------------------------------------------------------------------
def up_forward(x, w_pt, b, gamma, beta, *, compute_dtype=jnp.bfloat16):
    """x: (N, Cin, L) f32.  w_pt: PyTorch ConvTranspose1d weight (Cin, Cout, 3).
    `b` (conv bias) is accepted for interface parity but is cancelled exactly by
    training-mode BatchNorm, so it is unused."""
    del b
    N, Cin, L = x.shape
    Cout = w_pt.shape[1]

    # ConvTranspose1d(k=3, p=1, s=1) == Conv1d(pad=1) with channel-swapped, flipped taps.
    w_conv = jnp.flip(jnp.transpose(w_pt, (1, 0, 2)), axis=-1)        # (Cout, Cin, 3)
    w_stack = jnp.transpose(w_conv, (2, 0, 1)).astype(compute_dtype)  # (3, Cout, Cin)

    vmem_limit = _vmem_capacity_bytes() * 3 // 4        # ~48 MiB v7x, ~96 MiB v5e/v6e
    itemsize = jnp.dtype(compute_dtype).itemsize
    bt = _choose_batch_tile(N, Cin, Cout, L, itemsize, vmem_budget=vmem_limit // 2)
    num_tiles = N // bt

    cp = pltpu.CompilerParams(dimension_semantics=("parallel",),
                              vmem_limit_bytes=int(vmem_limit))
    conv_flops = 2 * N * L * Cout * 3 * Cin
    w_bytes = 3 * Cout * Cin * itemsize

    # ---- Pass 1: partial BN statistics ------------------------------------------------
    stats = pl.pallas_call(
        up_stats_kernel,
        grid=(num_tiles,),
        in_specs=[
            pl.BlockSpec((bt, Cin, L), lambda i: (i, 0, 0)),
            pl.BlockSpec((3, Cout, Cin), lambda i: (0, 0, 0)),
        ],
        out_specs=pl.BlockSpec((1, Cout, 2), lambda i: (i, 0, 0)),
        out_shape=jax.ShapeDtypeStruct((num_tiles, Cout, 2), jnp.float32),
        compiler_params=cp,
        cost_estimate=pl.CostEstimate(
            flops=conv_flops + 4 * N * Cout * L,
            transcendentals=0,
            bytes_accessed=4 * N * Cin * L + w_bytes + 4 * num_tiles * Cout * 2),
    )(x, w_stack)

    # ---- Tiny global stats reduction + BN coefficient folding (f32, wrapper side) ------
    totals = jnp.sum(stats, axis=0)                     # (Cout, 2)
    count = jnp.float32(N * L)
    mean = totals[:, 0] / count
    var = jnp.maximum(totals[:, 1] / count - mean * mean, 0.0)   # biased batch variance
    scale = gamma.astype(jnp.float32) * lax.rsqrt(var + EPS)
    shift = beta.astype(jnp.float32) - mean * scale

    # ---- Pass 2: recompute conv + normalize + ReLU, write output once -------------------
    out = pl.pallas_call(
        up_apply_kernel,
        grid=(num_tiles,),
        in_specs=[
            pl.BlockSpec((bt, Cin, L), lambda i: (i, 0, 0)),
            pl.BlockSpec((3, Cout, Cin), lambda i: (0, 0, 0)),
            pl.BlockSpec((Cout, 1), lambda i: (0, 0)),
            pl.BlockSpec((Cout, 1), lambda i: (0, 0)),
        ],
        out_specs=pl.BlockSpec((bt, Cout, L), lambda i: (i, 0, 0)),
        out_shape=jax.ShapeDtypeStruct((N, Cout, L), jnp.float32),
        compiler_params=cp,
        cost_estimate=pl.CostEstimate(
            flops=conv_flops + 3 * N * Cout * L,
            transcendentals=0,
            bytes_accessed=4 * N * Cin * L + 4 * N * Cout * L + w_bytes + 8 * Cout),
    )(x, w_stack, scale.reshape(Cout, 1), shift.reshape(Cout, 1))

    return out


# --------------------------------------------------------------------------------------
# Pure-JAX reference (no Pallas) for validation
# --------------------------------------------------------------------------------------
def up_reference(x, w_pt, b, gamma, beta):
    Cout = w_pt.shape[1]
    w_conv = jnp.flip(jnp.transpose(w_pt, (1, 0, 2)), axis=-1)   # (Cout, Cin, 3)
    y = lax.conv_general_dilated(
        x, w_conv, window_strides=(1,), padding=[(1, 1)],
        dimension_numbers=("NCH", "OIH", "NCH"))
    y = y + b.reshape(1, Cout, 1)
    mean = jnp.mean(y, axis=(0, 2), keepdims=True)
    var = jnp.mean((y - mean) ** 2, axis=(0, 2), keepdims=True)
    y = (y - mean) * lax.rsqrt(var + EPS)
    y = y * gamma.reshape(1, Cout, 1) + beta.reshape(1, Cout, 1)
    return jnp.maximum(y, 0.0)


if __name__ == "__main__":
    N, Cin, Cout, L = 2, 4, 8, 16
    key = jax.random.PRNGKey(0)
    kx, kw, kb = jax.random.split(key, 3)

    x = jax.random.normal(kx, (N, Cin, L), dtype=jnp.float32)
    # PyTorch ConvTranspose1d weight layout: (Cin, Cout, K)
    w_pt = jax.random.normal(kw, (Cin, Cout, 3), dtype=jnp.float32) * 0.1
    b = jax.random.normal(kb, (Cout,), dtype=jnp.float32) * 0.1
    gamma = jnp.ones((Cout,), dtype=jnp.float32)   # BatchNorm1d default init
    beta = jnp.zeros((Cout,), dtype=jnp.float32)

    ref = up_reference(x, w_pt, b, gamma, beta)

    # f32 MXU path: tight check against the pure-JAX reference.
    out_f32 = jax.block_until_ready(
        up_forward(x, w_pt, b, gamma, beta, compute_dtype=jnp.float32))
    assert out_f32.shape == (N, Cout, L)
    assert jnp.allclose(out_f32, ref, rtol=1e-4, atol=1e-5), "f32 path mismatch"

    # Default bf16-fed MXU path: looser tolerance from bf16 matmul inputs.
    out = jax.block_until_ready(up_forward(x, w_pt, b, gamma, beta))
    assert out.shape == (N, Cout, L)
    assert jnp.allclose(out, ref, rtol=3e-2, atol=3e-2), "bf16 path mismatch"

    print("KERNEL_OK")
</pallas_src>

<mosaic_0001>
module attributes {stable_mosaic.version = 11 : i64} {
  func.func @up_stats_kernel(%arg0: i32, %arg1: memref<1x4x16xf32, #tpu.memory_space<vmem>>, %arg2: memref<3x8x4xf32, #tpu.memory_space<vmem>>, %arg3: memref<1x8x2xf32, #tpu.memory_space<vmem>>) attributes {dimension_semantics = [#tpu.dimension_semantics<parallel>], iteration_bounds = array<i64: 2>, scalar_prefetch = 0 : i64, scratch_operands = 0 : i64, tpu.core_type = #tpu.core_type<tc>, window_params = [{transform_indices = @transform_0, window_bounds = array<i64: 1, 4, 16>}, {pipeline_mode = #tpu.pipeline_mode<synchronous>, transform_indices = @transform_1, window_bounds = array<i64: 3, 8, 4>}, {transform_indices = @transform_2, window_bounds = array<i64: 1, 8, 2>}]} {
    %c0 = arith.constant 0 : index
    %c0_0 = arith.constant 0 : index
    %c0_1 = arith.constant 0 : index
    %0 = vector.load %arg1[%c0, %c0_0, %c0_1] : memref<1x4x16xf32, #tpu.memory_space<vmem>>, vector<1x4x16xf32>
    %1 = tpu.iota {dimensions = array<i32: 2>} : vector<1x4x16xi32>
    %c0_i32 = arith.constant 0 : i32
    %2 = vector.broadcast %c0_i32 : i32 to vector<1x4x16xi32>
    %3 = arith.cmpi eq, %1, %2 : vector<1x4x16xi32>
    %c1_i32 = arith.constant 1 : i32
    %4 = tpu.dynamic_rotate %0 by %c1_i32 dim 2 : vector<1x4x16xf32>, i32 -> vector<1x4x16xf32>
    %cst = arith.constant 0.000000e+00 : f32
    %5 = vector.broadcast %cst : f32 to vector<1x4x16xf32>
    %6 = arith.select %3, %5, %4 : vector<1x4x16xi1>, vector<1x4x16xf32>
    %c15_i32 = arith.constant 15 : i32
    %7 = vector.broadcast %c15_i32 : i32 to vector<1x4x16xi32>
    %8 = arith.cmpi eq, %1, %7 : vector<1x4x16xi32>
    %c15_i32_2 = arith.constant 15 : i32
    %9 = tpu.dynamic_rotate %0 by %c15_i32_2 dim 2 : vector<1x4x16xf32>, i32 -> vector<1x4x16xf32>
    %cst_3 = arith.constant 0.000000e+00 : f32
    %10 = vector.broadcast %cst_3 : f32 to vector<1x4x16xf32>
    %11 = arith.select %8, %10, %9 : vector<1x4x16xi1>, vector<1x4x16xf32>
    %cst_4 = arith.constant 0.000000e+00 : f32
    %12 = vector.broadcast %cst_4 : f32 to vector<8x16xf32>
    %cst_5 = arith.constant 0.000000e+00 : f32
    %13 = vector.broadcast %cst_5 : f32 to vector<8x16xf32>
    %c0_6 = arith.constant 0 : index
    %c0_7 = arith.constant 0 : index
    %c0_8 = arith.constant 0 : index
    %14 = vector.load %arg2[%c0_6, %c0_7, %c0_8] : memref<3x8x4xf32, #tpu.memory_space<vmem>>, vector<1x8x4xf32>
    %15 = vector.shape_cast %14 : vector<1x8x4xf32> to vector<8x4xf32>
    %16 = vector.shape_cast %6 : vector<1x4x16xf32> to vector<4x16xf32>
    %cst_9 = arith.constant dense<0.000000e+00> : vector<8x16xf32>
    %17 = tpu.matmul %15, %16, %cst_9 {dimension_numbers = #tpu.dot_dimension_numbers<[1], [0], [0], [1], [0, 0, 1, 1], [], []>} : vector<8x4xf32>, vector<4x16xf32>, vector<8x16xf32> -> vector<8x16xf32>
    %c1 = arith.constant 1 : index
    %c0_10 = arith.constant 0 : index
    %c0_11 = arith.constant 0 : index
    %18 = vector.load %arg2[%c1, %c0_10, %c0_11] : memref<3x8x4xf32, #tpu.memory_space<vmem>>, vector<1x8x4xf32>
    %19 = vector.shape_cast %18 : vector<1x8x4xf32> to vector<8x4xf32>
    %20 = vector.shape_cast %0 : vector<1x4x16xf32> to vector<4x16xf32>
    %cst_12 = arith.constant dense<0.000000e+00> : vector<8x16xf32>
    %21 = tpu.matmul %19, %20, %cst_12 {dimension_numbers = #tpu.dot_dimension_numbers<[1], [0], [0], [1], [0, 0, 1, 1], [], []>} : vector<8x4xf32>, vector<4x16xf32>, vector<8x16xf32> -> vector<8x16xf32>
    %22 = arith.addf %17, %21 : vector<8x16xf32>
    %c2 = arith.constant 2 : index
    %c0_13 = arith.constant 0 : index
    %c0_14 = arith.constant 0 : index
    %23 = vector.load %arg2[%c2, %c0_13, %c0_14] : memref<3x8x4xf32, #tpu.memory_space<vmem>>, vector<1x8x4xf32>
    %24 = vector.shape_cast %23 : vector<1x8x4xf32> to vector<8x4xf32>
    %25 = vector.shape_cast %11 : vector<1x4x16xf32> to vector<4x16xf32>
    %cst_15 = arith.constant dense<0.000000e+00> : vector<8x16xf32>
    %26 = tpu.matmul %24, %25, %cst_15 {dimension_numbers = #tpu.dot_dimension_numbers<[1], [0], [0], [1], [0, 0, 1, 1], [], []>} : vector<8x4xf32>, vector<4x16xf32>, vector<8x16xf32> -> vector<8x16xf32>
    %27 = arith.addf %22, %26 : vector<8x16xf32>
    %28 = arith.addf %12, %27 : vector<8x16xf32>
    %29 = arith.mulf %27, %27 : vector<8x16xf32>
    %30 = arith.addf %13, %29 : vector<8x16xf32>
    %cst_16 = arith.constant dense<0.000000e+00> : vector<8xf32>
    %31 = vector.multi_reduction <add>, %28, %cst_16 [1] : vector<8x16xf32> to vector<8xf32>
    %32 = vector.shape_cast %31 : vector<8xf32> to vector<8x1xf32>
    %cst_17 = arith.constant dense<0.000000e+00> : vector<8xf32>
    %33 = vector.multi_reduction <add>, %30, %cst_17 [1] : vector<8x16xf32> to vector<8xf32>
    %34 = vector.shape_cast %33 : vector<8xf32> to vector<8x1xf32>
    %35 = tpu.concatenate %32, %34 in 1 : vector<8x1xf32>, vector<8x1xf32> -> vector<8x2xf32>
    %c0_18 = arith.constant 0 : index
    %c0_19 = arith.constant 0 : index
    %c0_20 = arith.constant 0 : index
    %36 = vector.load %arg3[%c0_18, %c0_19, %c0_20] : memref<1x8x2xf32, #tpu.memory_space<vmem>>, vector<1x8x2xf32>
    %37 = vector.shape_cast %36 : vector<1x8x2xf32> to vector<8x2xf32>
    %38 = vector.shape_cast %35 : vector<8x2xf32> to vector<1x8x2xf32>
    tpu.vector_store %arg3[%c0_18, %c0_19, %c0_20], %38 {strides = array<i32>} : memref<1x8x2xf32, #tpu.memory_space<vmem>>, vector<1x8x2xf32>,
    return
  }
  func.func @transform_0(%arg0: i32) -> (i32, i32, i32) {
    %c0_i32 = arith.constant 0 : i32
    %c0_i32_0 = arith.constant 0 : i32
    %c0_i32_1 = arith.constant 0 : i32
    return %arg0, %c0_i32, %c0_i32_0 : i32, i32, i32
  }
  func.func @transform_1(%arg0: i32) -> (i32, i32, i32) {
    %c0_i32 = arith.constant 0 : i32
    %c0_i32_0 = arith.constant 0 : i32
    %c0_i32_1 = arith.constant 0 : i32
    %c0_i32_2 = arith.constant 0 : i32
    return %c0_i32, %c0_i32_0, %c0_i32_1 : i32, i32, i32
  }
  func.func @transform_2(%arg0: i32) -> (i32, i32, i32) {
    %c0_i32 = arith.constant 0 : i32
    %c0_i32_0 = arith.constant 0 : i32
    %c0_i32_1 = arith.constant 0 : i32
    return %arg0, %c0_i32, %c0_i32_0 : i32, i32, i32
  }
}

</mosaic_0001>

<llo_original>
// kernel: tpu_custom_call.1
$region0: #{tpu_custom_call.1}
  #allocation0 [shape = 'u32[]', space=smem, size = 0x4, offset = 0x4, fixed_abs, tag = 'smem constant byte address 0x4 - core index']
  #allocation1 [shape = 'u32[144,128]{1,0:T(1,128)}', space=vmem, size = 0x12000, scoped, tag = 'internal scratch']
  %s0 = inlined_call_operand.vmem [shape: f32[2,4,16], index: 0, kind: input, shape index: {}]
  %s1 = inlined_call_operand.vmem [shape: f32[3,8,4], index: 1, kind: input, shape index: {}]
  %s2 = inlined_call_operand.vmem [shape: f32[2,8,2], index: 2, kind: output, shape index: {}]
  %s3 = sld [smem:[#allocation0]]
  $region41: #{tpu_custom_call.1} parent=0
    _
  %s5 = ssub.s32 1, %s3
  %s6 = scalar_select 0, %s5, %s3
  loop: start=0, step=1, limit=4
  $region2: #{tpu_custom_call.1} parent=0 // loop_pre_header
    _
  $region3: #{tpu_custom_call.1} parent=0 // loop_header
    %s8 = sphi 0, %s12
    %p9 = scmp.ge.s32.totalorder %s8, 4
    %s18 = sphi 0, %s20
    %s21 = sphi 0, %s18
    %s22 = sphi 0, %s21
    %s38 = sphi 0, %s22
    %s42 = sphi 0, %s42
    %s44 = sphi 0, %s42
    %s45 = sphi 0, %s44
    %s59 = sphi 0, %s45
    %s65 = sphi 0, %s67
    %s68 = sphi 0, %s65
    %s69 = sphi 0, %s68
    %s85 = sphi 0, %s69
  $region4: #{tpu_custom_call.1} parent=0 // loop_header_branch
    %11 = sbr.rel (%p9) target = $region8
  $region5: #{tpu_custom_call.1} parent=0 // loop_body
    %s13 = ssub.s32 %s8, 1
    %s14 = ssub.s32 %s8, 2
    %s15 = sadd.s32 %s8, 1
    %s16 = ssub.s32 %s8, %s15
    %p17 = scmp.eq.s32.totalorder %s16, 0
    %s19 = sadd.s32 %s18, 1
    %s20 = scalar_select %p17, %s18, %s19
    %p23 = pneg %p17
    %p24 = scmp.eq.s32.totalorder %s8, 1
    %p25 = por %p23, %p24
    %p26 = scmp.ne.s32.totalorder %s18, %s21
    %p27 = scmp.eq.s32.totalorder %s8, 0
    %p28 = por %p26, %p27
    %p29 = scmp.ne.s32.totalorder %s18, %s21
    %p30 = scmp.eq.s32.totalorder %s13, 1
    %p31 = por %p29, %p30
    %p32 = scmp.ne.s32.totalorder %s21, %s22
    %p33 = scmp.eq.s32.totalorder %s13, 0
    %p34 = por %p32, %p33
    %p35 = scmp.ne.s32.totalorder %s21, %s22
    %p36 = scmp.eq.s32.totalorder %s14, 1
    %p37 = por %p35, %p36
    %p39 = scmp.ne.s32.totalorder %s22, %s38
    %p40 = scmp.eq.s32.totalorder %s14, 0
    %p41 = por %p39, %p40
    %s43 = sadd.s32 %s42, 1
    %p46 = scmp.eq.s32.totalorder %s8, 1
    %p47 = scmp.ne.s32.totalorder %s42, %s44
    %p48 = scmp.eq.s32.totalorder %s8, 0
    %p49 = por %p47, %p48
    %p50 = scmp.ne.s32.totalorder %s42, %s44
    %p51 = scmp.eq.s32.totalorder %s13, 1
    %p52 = por %p50, %p51
    %p53 = scmp.ne.s32.totalorder %s44, %s45
    %p54 = scmp.eq.s32.totalorder %s13, 0
    %p55 = por %p53, %p54
    %p56 = scmp.ne.s32.totalorder %s44, %s45
    %p57 = scmp.eq.s32.totalorder %s14, 1
    %p58 = por %p56, %p57
    %p60 = scmp.ne.s32.totalorder %s45, %s59
    %p61 = scmp.eq.s32.totalorder %s14, 0
    %p62 = por %p60, %p61
    %s63 = ssub.s32 %s8, %s15
    %p64 = scmp.eq.s32.totalorder %s63, 0
    %s66 = sadd.s32 %s65, 1
    %s67 = scalar_select %p64, %s65, %s66
    %p70 = pneg %p64
    %p71 = scmp.eq.s32.totalorder %s8, 1
    %p72 = por %p70, %p71
    %p73 = scmp.ne.s32.totalorder %s65, %s68
    %p74 = scmp.eq.s32.totalorder %s8, 0
    %p75 = por %p73, %p74
    %p76 = scmp.ne.s32.totalorder %s65, %s68
    %p77 = scmp.eq.s32.totalorder %s13, 1
    %p78 = por %p76, %p77
    %p79 = scmp.ne.s32.totalorder %s68, %s69
    %p80 = scmp.eq.s32.totalorder %s13, 0
    %p81 = por %p79, %p80
    %p82 = scmp.ne.s32.totalorder %s68, %s69
    %p83 = scmp.eq.s32.totalorder %s14, 1
    %p84 = por %p82, %p83
    %p86 = scmp.ne.s32.totalorder %s69, %s85
    %p87 = scmp.eq.s32.totalorder %s14, 0
    %p88 = por %p86, %p87
    %p89 = scmp.le.s32.totalorder 1, %s8
    %p90 = scmp.lt.s32.totalorder %s8, 3
    %p91 = pnand %p89, %p90
    %p92 = pneg %p91
    // Predicated region
    $region9: #{tpu_custom_call.1} parent=5 // pred_check
      _
    $region10: #{tpu_custom_call.1} parent=5 // pred_check_branch
      %94 = sbr.rel (%p91) target = $region12
    $region11: #{tpu_custom_call.1} parent=5 // pred_region
      %s95 = ssub.s32 %s8, 1
      // Predicated region
      $region13: #{tpu_custom_call.1} parent=11 // pred_check
        %p96 = pneg %p55
      $region14: #{tpu_custom_call.1} parent=11 // pred_check_branch
        %98 = sbr.rel (%p96) target = $region16
      $region15: #{tpu_custom_call.1} parent=11 // pred_region
        _
      $region16: #{tpu_custom_call.1} parent=11 // pred_fallthru
        _
    $region12: #{tpu_custom_call.1} parent=5 // pred_fallthru
      _
    %p99 = scmp.lt.s32.totalorder %s8, 2
    // Predicated region
    $region17: #{tpu_custom_call.1} parent=5 // pred_check
      %p100 = pneg %p99
    $region18: #{tpu_custom_call.1} parent=5 // pred_check_branch
      %102 = sbr.rel (%p100) target = $region20
    $region19: #{tpu_custom_call.1} parent=5 // pred_region
      // Predicated region
      $region21: #{tpu_custom_call.1} parent=19 // pred_check
        %p103 = pneg %p28
      $region22: #{tpu_custom_call.1} parent=19 // pred_check_branch
        %105 = sbr.rel (%p103) target = $region24
      $region23: #{tpu_custom_call.1} parent=19 // pred_region
        %p106 = scmp.lt.s32.totalorder %s8, 1
        %s107 = scalar_select %p106, %s8, 1
        %s108 = smul.addr %s107, 4
        %s109 = scalar_lea.vmem %s0, %s108
      $region24: #{tpu_custom_call.1} parent=19 // pred_fallthru
        _
    $region20: #{tpu_custom_call.1} parent=5 // pred_fallthru
      _
    %p110 = scmp.le.s32.totalorder 1, %s8
    %p111 = scmp.lt.s32.totalorder %s8, 3
    %p112 = pnand %p110, %p111
    %p113 = pneg %p112
    // Predicated region
    $region25: #{tpu_custom_call.1} parent=5 // pred_check
      _
    $region26: #{tpu_custom_call.1} parent=5 // pred_check_branch
      %115 = sbr.rel (%p112) target = $region28
    $region27: #{tpu_custom_call.1} parent=5 // pred_region
      %s116 = ssub.s32 %s8, 1
      %p117 = scmp.lt.s32.totalorder %s13, 1
      %s118 = scalar_select %p117, %s13, 1
      %s119 = smul.addr %s118, 4
      %s120 = scalar_lea.vmem %s0, %s119
      %p121 = pneg %p34
      %p122 = pneg %p31
      %p123 = pneg %p55
      %p124 = pneg %p52
      %p125 = pneg %p81
      %p126 = pneg %p78
      %p127 = scmp.lt.s32.totalorder %s13, 1
      %s128 = scalar_select %p127, %s13, 1
      %s129 = smul.addr %s128, 8
      %s130 = scalar_lea.vmem %s2, %s129
      %p131 = scmp.lt.s32.totalorder %s13, 1
      %s132 = scalar_select %p131, %s13, 1
      %s133 = smul.addr %s132, 4
      %s134 = scalar_lea.vmem %s0, %s133
      %p135 = scmp.lt.s32.totalorder %s13, 1
      %s136 = scalar_select %p135, %s13, 1
      %s137 = smul.addr %s136, 8
      %s138 = scalar_lea.vmem %s2, %s137
      %v139 = vld [vmem:[%s134] sm:$0xf]
      %v140 = vlaneseq
      %v141 = vand.u32 %v140, 127
      %vm142 = vcmp.eq.s32.totalorder %v141, 0
      %vm143 = vcmask 1047680
      %144 = vrot.lane.b32.xlu0 %v139, 16
      %v145 = vpop.permute.xlu0 %144
      %v146 = vsel %vm143, %v145, %v139
      %147 = vrot.lane.b32.xlu0 %v146, 16
      %v148 = vpop.permute.xlu0 %147
      %v149 = vsel %vm143, %v148, %v139
      %151 = vrot.lane.b32.xlu0 %v149, 113
      %v152 = vpop.permute.xlu0 %151
      %v154 = vsel %vm142, 0.0, %v152
      %vm155 = vcmp.eq.s32.totalorder %v141, 15
      %156 = vrot.lane.b32.xlu0 %v149, 127
      %v157 = vpop.permute.xlu0 %156
      %v159 = vsel %vm155, 0.0, %v157
      %v160 = vld [vmem:[%s1] sm:$0xff]
      %s161 = scalar_lea.vmem %s1, 8
      %v162 = vld [vmem:[%s161] sm:$0xff]
      %vm163 = vcmask 31744
      %v165 = vsel %vm163, %v162, 0
      %vm167 = vcmask 1043456
      %v169 = vsel %vm167, %v139, 0
      %171 = vmatprep.subr.mxu0 0.0
      %172 = vmatpush1.msra.mxu0 0.0
      %173 = vmatprep.subr.mxu0 0.0
      %174 = vmatpush1.msra.mxu0 0.0
      %175 = vmatprep.subr.mxu0 0.0
      %176 = vmatpush1.msra.mxu0 0.0
      %177 = vmatprep.subr.mxu0 0.0
      %178 = vmatpush1.msra.mxu0 0.0
      %179 = vmatprep.subr.mxu0 0.0
      %180 = vmatpush1.msra.mxu0 0.0
      %181 = vmatprep.subr.mxu0 0.0
      %182 = vmatpush1.msra.mxu0 0.0
      %183 = vmatprep.subr.mxu0 0.0
      %184 = vmatpush1.msra.mxu0 0.0
      %185 = vmatprep.subr.mxu0 0.0
      %186 = vmatpush1.msra.mxu0 0.0
      %187 = vmatprep.subr.mxu0 0.0
      %188 = vmatpush1.msra.mxu0 0.0
      %189 = vmatprep.subr.mxu0 0.0
      %190 = vmatpush1.msra.mxu0 0.0
      %191 = vmatprep.subr.mxu0 0.0
      %192 = vmatpush1.msra.mxu0 0.0
      %193 = vmatprep.subr.mxu0 0.0
      %194 = vmatpush1.msra.mxu0 0.0
      %195 = vmatprep.subr.mxu0 0.0
      %196 = vmatpush1.msra.mxu0 0.0
      %197 = vmatprep.subr.mxu0 0.0
      %198 = vmatpush1.msra.mxu0 0.0
      %199 = vmatprep.subr.mxu0 0.0
      %200 = vmatpush1.msra.mxu0 0.0
      %201 = vmatprep.subr.mxu0 0.0
      %202 = vmatpush1.msra.mxu0 %v169
      %203 = vmatprep.subr.mxu0 0.0
      %204 = vmatpush2.msra.mxu0 0.0
      %205 = vmatprep.subr.mxu0 0.0
      %206 = vmatpush2.msra.mxu0 0.0
      %207 = vmatprep.subr.mxu0 0.0
      %208 = vmatpush2.msra.mxu0 0.0
      %209 = vmatprep.subr.mxu0 0.0
      %210 = vmatpush2.msra.mxu0 0.0
      %211 = vmatprep.subr.mxu0 0.0
      %212 = vmatpush2.msra.mxu0 0.0
      %213 = vmatprep.subr.mxu0 0.0
      %214 = vmatpush2.msra.mxu0 0.0
      %215 = vmatprep.subr.mxu0 0.0
      %216 = vmatpush2.msra.mxu0 0.0
      %217 = vmatprep.subr.mxu0 0.0
      %218 = vmatpush2.msra.mxu0 0.0
      %219 = vmatprep.subr.mxu0 0.0
      %220 = vmatpush2.msra.mxu0 0.0
      %221 = vmatprep.subr.mxu0 0.0
      %222 = vmatpush2.msra.mxu0 0.0
      %223 = vmatprep.subr.mxu0 0.0
      %224 = vmatpush2.msra.mxu0 0.0
      %225 = vmatprep.subr.mxu0 0.0
      %226 = vmatpush2.msra.mxu0 0.0
      %227 = vmatprep.subr.mxu0 0.0
      %228 = vmatpush2.msra.mxu0 0.0
      %229 = vmatprep.subr.mxu0 0.0
      %230 = vmatpush2.msra.mxu0 0.0
      %231 = vmatprep.subr.mxu0 0.0
      %232 = vmatpush2.msra.mxu0 0.0
      %233 = vmatprep.subr.mxu0 0.0
      %234 = vmatpush2.msra.mxu0 0.0
      %235 = vmatprep.mubr.f32.mxu0 0.0
      %236 = vmatmul.mubr.f32.gmra.mxu0 %v165
      %v237 = vpop.f32.mrf.mxu0
      %v238 = vadd.f32 0.0, %v237
      %v239 = vpop.f32.mrf.mxu0
      %240 = vdwg.mxu0
      %v242 = vsel %vm163, %v160, 0
      %v245 = vsel %vm167, %v154, 0
      %247 = vmatprep.subr.mxu0 0.0
      %248 = vmatpush1.msra.mxu0 0.0
      %249 = vmatprep.subr.mxu0 0.0
      %250 = vmatpush1.msra.mxu0 0.0
      %251 = vmatprep.subr.mxu0 0.0
      %252 = vmatpush1.msra.mxu0 0.0
      %253 = vmatprep.subr.mxu0 0.0
      %254 = vmatpush1.msra.mxu0 0.0
      %255 = vmatprep.subr.mxu0 0.0
      %256 = vmatpush1.msra.mxu0 0.0
      %257 = vmatprep.subr.mxu0 0.0
      %258 = vmatpush1.msra.mxu0 0.0
      %259 = vmatprep.subr.mxu0 0.0
      %260 = vmatpush1.msra.mxu0 0.0
      %261 = vmatprep.subr.mxu0 0.0
      %262 = vmatpush1.msra.mxu0 0.0
      %263 = vmatprep.subr.mxu0 0.0
      %264 = vmatpush1.msra.mxu0 0.0
      %265 = vmatprep.subr.mxu0 0.0
      %266 = vmatpush1.msra.mxu0 0.0
      %267 = vmatprep.subr.mxu0 0.0
      %268 = vmatpush1.msra.mxu0 0.0
      %269 = vmatprep.subr.mxu0 0.0
      %270 = vmatpush1.msra.mxu0 0.0
      %271 = vmatprep.subr.mxu0 0.0
      %272 = vmatpush1.msra.mxu0 0.0
      %273 = vmatprep.subr.mxu0 0.0
      %274 = vmatpush1.msra.mxu0 0.0
      %275 = vmatprep.subr.mxu0 0.0
      %276 = vmatpush1.msra.mxu0 0.0
      %277 = vmatprep.subr.mxu0 0.0
      %278 = vmatpush1.msra.mxu0 %v245
      %279 = vmatprep.subr.mxu0 0.0
      %280 = vmatpush2.msra.mxu0 0.0
      %281 = vmatprep.subr.mxu0 0.0
      %282 = vmatpush2.msra.mxu0 0.0
      %283 = vmatprep.subr.mxu0 0.0
      %284 = vmatpush2.msra.mxu0 0.0
      %285 = vmatprep.subr.mxu0 0.0
      %286 = vmatpush2.msra.mxu0 0.0
      %287 = vmatprep.subr.mxu0 0.0
      %288 = vmatpush2.msra.mxu0 0.0
      %289 = vmatprep.subr.mxu0 0.0
      %290 = vmatpush2.msra.mxu0 0.0
      %291 = vmatprep.subr.mxu0 0.0
      %292 = vmatpush2.msra.mxu0 0.0
      %293 = vmatprep.subr.mxu0 0.0
      %294 = vmatpush2.msra.mxu0 0.0
      %295 = vmatprep.subr.mxu0 0.0
      %296 = vmatpush2.msra.mxu0 0.0
      %297 = vmatprep.subr.mxu0 0.0
      %298 = vmatpush2.msra.mxu0 0.0
      %299 = vmatprep.subr.mxu0 0.0
      %300 = vmatpush2.msra.mxu0 0.0
      %301 = vmatprep.subr.mxu0 0.0
      %302 = vmatpush2.msra.mxu0 0.0
      %303 = vmatprep.subr.mxu0 0.0
      %304 = vmatpush2.msra.mxu0 0.0
      %305 = vmatprep.subr.mxu0 0.0
      %306 = vmatpush2.msra.mxu0 0.0
      %307 = vmatprep.subr.mxu0 0.0
      %308 = vmatpush2.msra.mxu0 0.0
      %309 = vmatprep.subr.mxu0 0.0
      %310 = vmatpush2.msra.mxu0 0.0
      %311 = vmatprep.mubr.f32.mxu0 0.0
      %312 = vmatmul.mubr.f32.gmra.mxu0 %v242
      %v313 = vpop.f32.mrf.mxu0
      %v314 = vadd.f32 %v238, %v313
      %v315 = vpop.f32.mrf.mxu0
      %316 = vdwg.mxu0
      %s317 = scalar_lea.vmem %s1, 16
      %v318 = vld [vmem:[%s317] sm:$0xff]
      %v320 = vsel %vm163, %v318, 0
      %v323 = vsel %vm167, %v159, 0
      %325 = vmatprep.subr.mxu0 0.0
      %326 = vmatpush1.msra.mxu0 0.0
      %327 = vmatprep.subr.mxu0 0.0
      %328 = vmatpush1.msra.mxu0 0.0
      %329 = vmatprep.subr.mxu0 0.0
      %330 = vmatpush1.msra.mxu0 0.0
      %331 = vmatprep.subr.mxu0 0.0
      %332 = vmatpush1.msra.mxu0 0.0
      %333 = vmatprep.subr.mxu0 0.0
      %334 = vmatpush1.msra.mxu0 0.0
      %335 = vmatprep.subr.mxu0 0.0
      %336 = vmatpush1.msra.mxu0 0.0
      %337 = vmatprep.subr.mxu0 0.0
      %338 = vmatpush1.msra.mxu0 0.0
      %339 = vmatprep.subr.mxu0 0.0
      %340 = vmatpush1.msra.mxu0 0.0
      %341 = vmatprep.subr.mxu0 0.0
      %342 = vmatpush1.msra.mxu0 0.0
      %343 = vmatprep.subr.mxu0 0.0
      %344 = vmatpush1.msra.mxu0 0.0
      %345 = vmatprep.subr.mxu0 0.0
      %346 = vmatpush1.msra.mxu0 0.0
      %347 = vmatprep.subr.mxu0 0.0
      %348 = vmatpush1.msra.mxu0 0.0
      %349 = vmatprep.subr.mxu0 0.0
      %350 = vmatpush1.msra.mxu0 0.0
      %351 = vmatprep.subr.mxu0 0.0
      %352 = vmatpush1.msra.mxu0 0.0
      %353 = vmatprep.subr.mxu0 0.0
      %354 = vmatpush1.msra.mxu0 0.0
      %355 = vmatprep.subr.mxu0 0.0
      %356 = vmatpush1.msra.mxu0 %v323
      %357 = vmatprep.subr.mxu0 0.0
      %358 = vmatpush2.msra.mxu0 0.0
      %359 = vmatprep.subr.mxu0 0.0
      %360 = vmatpush2.msra.mxu0 0.0
      %361 = vmatprep.subr.mxu0 0.0
      %362 = vmatpush2.msra.mxu0 0.0
      %363 = vmatprep.subr.mxu0 0.0
      %364 = vmatpush2.msra.mxu0 0.0
      %365 = vmatprep.subr.mxu0 0.0
      %366 = vmatpush2.msra.mxu0 0.0
      %367 = vmatprep.subr.mxu0 0.0
      %368 = vmatpush2.msra.mxu0 0.0
      %369 = vmatprep.subr.mxu0 0.0
      %370 = vmatpush2.msra.mxu0 0.0
      %371 = vmatprep.subr.mxu0 0.0
      %372 = vmatpush2.msra.mxu0 0.0
      %373 = vmatprep.subr.mxu0 0.0
      %374 = vmatpush2.msra.mxu0 0.0
      %375 = vmatprep.subr.mxu0 0.0
      %376 = vmatpush2.msra.mxu0 0.0
      %377 = vmatprep.subr.mxu0 0.0
      %378 = vmatpush2.msra.mxu0 0.0
      %379 = vmatprep.subr.mxu0 0.0
      %380 = vmatpush2.msra.mxu0 0.0
      %381 = vmatprep.subr.mxu0 0.0
      %382 = vmatpush2.msra.mxu0 0.0
      %383 = vmatprep.subr.mxu0 0.0
      %384 = vmatpush2.msra.mxu0 0.0
      %385 = vmatprep.subr.mxu0 0.0
      %386 = vmatpush2.msra.mxu0 0.0
      %387 = vmatprep.subr.mxu0 0.0
      %388 = vmatpush2.msra.mxu0 0.0
      %389 = vmatprep.mubr.f32.mxu0 0.0
      %390 = vmatmul.mubr.f32.gmra.mxu0 %v320
      %v391 = vpop.f32.mrf.mxu0
      %v392 = vadd.f32 0.0, %v391
      %v393 = vpop.f32.mrf.mxu0
      %394 = vdwg.mxu0
      %v395 = vadd.f32 %v314, %v392
      %v396 = vadd.f32 %v395, 0.0
      %v397 = vmul.f32 %v395, %v395
      %v398 = vadd.f32 %v397, 0.0
      %vm399 = vcmask 130048
      %v400 = vsel %vm399, %v396, 0.0
      %401 = vadd.xlane.f32.xlu0 %v400
      %v402 = vpop.xlane.xlu0 %401
      %v403 = vsel %vm399, %v398, 0.0
      %404 = vadd.xlane.f32.xlu0 %v403
      %v405 = vpop.xlane.xlu0 %404
      %vm406 = vcmask 7168
      %v407 = vsel %vm406, %v402, %v405
      %vm408 = vcmask 15360
      %409 = vst.msk [vmem:[%s138] sm:$0xff] %vm408, %v407
      %p410 = scmp.lt.s32.totalorder %s13, 1
      %s411 = scalar_select %p410, %s13, 1
      %s412 = smul.addr %s411, 8
      %s413 = scalar_lea.vmem %s2, %s412
      // Predicated region
      $region29: #{tpu_custom_call.1} parent=27 // pred_check
        %p414 = pneg %p78
      $region30: #{tpu_custom_call.1} parent=27 // pred_check_branch
        %416 = sbr.rel (%p414) target = $region32
      $region31: #{tpu_custom_call.1} parent=27 // pred_region
        _
      $region32: #{tpu_custom_call.1} parent=27 // pred_fallthru
        _
    $region28: #{tpu_custom_call.1} parent=5 // pred_fallthru
      _
    %p417 = scmp.le.s32.totalorder 2, %s8
    // Predicated region
    $region33: #{tpu_custom_call.1} parent=5 // pred_check
      %p418 = pneg %p417
    $region34: #{tpu_custom_call.1} parent=5 // pred_check_branch
      %420 = sbr.rel (%p418) target = $region36
    $region35: #{tpu_custom_call.1} parent=5 // pred_region
      %s421 = ssub.s32 %s8, 2
      // Predicated region
      $region37: #{tpu_custom_call.1} parent=35 // pred_check
        %p422 = pneg %p84
      $region38: #{tpu_custom_call.1} parent=35 // pred_check_branch
        %424 = sbr.rel (%p422) target = $region40
      $region39: #{tpu_custom_call.1} parent=35 // pred_region
        %p425 = scmp.lt.s32.totalorder %s14, 1
        %s426 = scalar_select %p425, %s14, 1
        %s427 = smul.addr %s426, 8
        %s428 = scalar_lea.vmem %s2, %s427
      $region40: #{tpu_custom_call.1} parent=35 // pred_fallthru
        _
    $region36: #{tpu_custom_call.1} parent=5 // pred_fallthru
      _
  $region6: #{tpu_custom_call.1} parent=0 // loop_footer
    %s12 = sadd.s32 1, %s8
  $region7: #{tpu_custom_call.1} parent=0 // loop_footer_branch
    %7 = sbr.rel target = $region3
  $region8: #{tpu_custom_call.1} parent=0 // loop_exit
    _

</llo_original>
